<compile_context>
chip_gen: v5e
topology: v5e:2x2
jax: 0.10.0
libtpu: 0.0.40
codegen_flags: <defaults>
</compile_context>

<pallas_src>
import jax
import jax.numpy as jnp
from jax.experimental import pallas as pl
from jax.experimental.pallas import tpu as pltpu

NUM_HEROES = 10  # hardcoded in the PyTorch module ("10 * previous_layer_size")


def _round_up(x, m):
    return ((x + m - 1) // m) * m


def _lane_pad(n):
    return _round_up(n, 128)


# ----------------------------- fused Pallas kernel ----------------------------- #

def _fused_kernel(x_ref, w1_ref, b1_ref, w2_ref, b2_ref, w3_ref, b3_ref,
                  fw1_ref, fb1_ref, fw2_ref, fb2_ref, o_ref):
    """One batch tile: shared MLP over the 10 heroes + concat + final MLP, all in VMEM.

    x_ref:   [H, TILE_B, F]    f32 as stored; cast to the weights' dtype after DMA
    fw1_ref: [H, D, n_hidden]  (fw1 reshaped hero-major in the wrapper)
    o_ref:   [TILE_B, num_labels]
    """
    h, tb, f = x_ref.shape
    d = w3_ref.shape[1]
    cdt = w1_ref.dtype  # compute dtype (bf16 default, f32 for the exact path)

    # ---- shared MLP: all 10 heroes batched along rows -> 3 big 2-D matmuls ----
    x = x_ref[...].astype(cdt).reshape(h * tb, f)
    a = jnp.dot(x, w1_ref[...], preferred_element_type=jnp.float32)
    a = jnp.maximum(a + b1_ref[...], 0.0)                      # f32 elementwise (v5e-safe)
    a = jnp.dot(a.astype(cdt), w2_ref[...], preferred_element_type=jnp.float32)
    a = jnp.maximum(a + b2_ref[...], 0.0)
    a = jnp.dot(a.astype(cdt), w3_ref[...], preferred_element_type=jnp.float32)
    a = jnp.maximum(a + b3_ref[...], 0.0)

    # ---- concat + first final layer, done algebraically:
    #      cat_h(vals)[b] @ fw1 == sum_h vals[h][b] @ fw1[h]   (no [B,200] tensor) ----
    # reshape only splits the sublane-major dim (tb is a multiple of 8) -> layout-preserving
    a3 = a.reshape(h, tb, d).astype(cdt)
    per_hero = jnp.einsum("hbd,hdn->hbn", a3, fw1_ref[...],
                          preferred_element_type=jnp.float32)
    hid = jnp.maximum(per_hero.sum(axis=0) + fb1_ref[...], 0.0)

    # ---- final projection (no ReLU) ----
    out = jnp.dot(hid.astype(cdt), fw2_ref[...],
                  preferred_element_type=jnp.float32) + fb2_ref[...]
    o_ref[...] = out.astype(o_ref.dtype)


# -------------------------------- Python wrapper -------------------------------- #

def shared_hero_weights_ff(hero_features, params, *, compute_dtype=jnp.bfloat16,
                           tile_b=None):
    """hero_features: [H=10, B, F] float32.  Returns [B, num_labels] float32."""
    H, B, F = hero_features.shape
    assert H == NUM_HEROES
    (w1, b1, w2, b2, w3, b3, fw1, fb1, fw2, fb2) = params
    H1, H2, D = w1.shape[1], w2.shape[1], w3.shape[1]
    NH = fw1.shape[1]
    L = fw2.shape[1]
    c_item = jnp.dtype(compute_dtype).itemsize

    # Weights cast once (tiny arrays); biases stay f32 (all elementwise math is f32).
    # fw1 rows are hero-major -> expose as [H, D, NH] for the per-hero contraction.
    w1c = w1.astype(compute_dtype)
    w2c = w2.astype(compute_dtype)
    w3c = w3.astype(compute_dtype)
    fw1c = fw1.reshape(NUM_HEROES, D, NH).astype(compute_dtype)
    fw2c = fw2.astype(compute_dtype)

    # The big [10, B, F] input is NOT cast or padded here (each would be a full
    # extra HBM read+write); the kernel casts each block after DMA.  Only a tiny
    # pad to 8 rows is applied when B < 8 so the batch tile is sublane-aligned.
    x = hero_features
    B_eff = B
    if B < 8:
        B_eff = 8
        x = jnp.pad(x, ((0, 0), (0, B_eff - B), (0, 0)))

    # ---- batch tile from VMEM capacity (v7x: 64 MiB, v5e/v6e: 128 MiB) ----
    try:
        vmem_cap = int(pltpu.get_tpu_info().vmem_capacity_bytes)
    except Exception:
        vmem_cap = 64 << 20  # conservative fallback (v7x-sized VMEM)

    if tile_b is None:
        # Peak-live VMEM per batch row (narrow minor dims pad to 128 lanes):
        # double-buffered f32 input block + the widest pair of adjacent
        # shared-layer activations (f32 accum + compute-dtype copy).
        per_row = (2 * NUM_HEROES * _lane_pad(F) * 4
                   + NUM_HEROES * _lane_pad(H1) * (4 + c_item)
                   + NUM_HEROES * _lane_pad(H2) * 4)
        per_row = int(per_row * 1.25)                      # allocator slack
        budget = int(0.45 * vmem_cap)
        hard_cap = 2048 if vmem_cap <= (80 << 20) else 4096
        tile_b = max(8, min(hard_cap, (budget // per_row) // 8 * 8))
    tile_b = max(8, (int(tile_b) // 8) * 8)
    if B_eff > 8:
        # guarantee >= 2 grid steps so both v7x TensorCores get a tile
        tile_b = min(tile_b, max(8, _round_up(pl.cdiv(B_eff, 2), 8)))
    tile_b = min(tile_b, _round_up(B_eff, 8))
    grid = (pl.cdiv(B_eff, tile_b),)

    # scoped-VMEM limit: generous but below physical capacity on every generation
    vmem_limit = int(min(vmem_cap * 3 // 4, 100 << 20))

    # ---- advisory cost estimate for the XLA scheduler ----
    param_arrays = (w1c, b1, w2c, b2, w3c, b3, fw1c, fb1, fw2c, fb2)
    param_bytes = sum(int(p.size) * p.dtype.itemsize for p in param_arrays)
    flops = (2 * NUM_HEROES * B_eff * (F * H1 + H1 * H2 + H2 * D + D * NH)
             + 2 * B_eff * NH * L)
    bytes_accessed = int(NUM_HEROES * B_eff * F * x.dtype.itemsize
                         + B_eff * L * 4 + param_bytes)
    cost = pl.CostEstimate(flops=int(flops), transcendentals=0,
                           bytes_accessed=bytes_accessed)

    def _full_spec(shape):
        n = len(shape)
        return pl.BlockSpec(shape, lambda i, n=n: (0,) * n)

    grid_spec = pltpu.PrefetchScalarGridSpec(
        num_scalar_prefetch=0,
        grid=grid,
        in_specs=[
            pl.BlockSpec((NUM_HEROES, tile_b, F), lambda i: (0, i, 0)),
            _full_spec(w1c.shape), _full_spec(b1.shape),
            _full_spec(w2c.shape), _full_spec(b2.shape),
            _full_spec(w3c.shape), _full_spec(b3.shape),
            _full_spec(fw1c.shape), _full_spec(fb1.shape),
            _full_spec(fw2c.shape), _full_spec(fb2.shape),
        ],
        out_specs=pl.BlockSpec((tile_b, L), lambda i: (i, 0)),
    )

    out = pl.pallas_call(
        _fused_kernel,
        out_shape=jax.ShapeDtypeStruct((B_eff, L), jnp.float32),
        grid_spec=grid_spec,
        compiler_params=pltpu.CompilerParams(
            dimension_semantics=("parallel",),   # batch tiles shard across v7x's 2 TCs
            vmem_limit_bytes=vmem_limit),
        cost_estimate=cost,
    )(x, w1c, b1, w2c, b2, w3c, b3, fw1c, fb1, fw2c, fb2)

    return out[:B] if B_eff != B else out


# ----------------------------- deterministic params ----------------------------- #

def init_params(key, num_features_per_hero, num_labels,
                shared_layer_sizes=(100, 60, 20), final_layer_sizes=(100,)):
    """Linear weights stored as [in, out] (x @ W + b), biases as [1, out]."""
    sizes = []
    prev = num_features_per_hero
    for s in shared_layer_sizes:
        sizes.append((prev, s))
        prev = s
    prev = NUM_HEROES * prev
    for s in final_layer_sizes:
        sizes.append((prev, s))
        prev = s
    sizes.append((prev, num_labels))

    params = []
    for (fan_in, fan_out) in sizes:
        key, kw, kb = jax.random.split(key, 3)
        bound = 1.0 / jnp.sqrt(fan_in)
        w = jax.random.uniform(kw, (fan_in, fan_out), jnp.float32, -bound, bound)
        b = jax.random.uniform(kb, (1, fan_out), jnp.float32, -bound, bound)
        params += [w, b]
    return tuple(params)


# -------------------------------- reference (JAX) -------------------------------- #

def reference_forward(hero_features, params):
    (w1, b1, w2, b2, w3, b3, fw1, fb1, fw2, fb2) = params
    vals = []
    for h in range(hero_features.shape[0]):
        x = hero_features[h]
        x = jnp.maximum(x @ w1 + b1, 0.0)
        x = jnp.maximum(x @ w2 + b2, 0.0)
        x = jnp.maximum(x @ w3 + b3, 0.0)
        vals.append(x)
    x = jnp.concatenate(vals, axis=1)
    x = jnp.maximum(x @ fw1 + fb1, 0.0)
    x = x @ fw2 + fb2
    return x


if __name__ == "__main__":
    batch = 2
    num_features_per_hero = 32
    num_labels = 8

    key = jax.random.PRNGKey(0)
    key, kx = jax.random.split(key)
    hero_features = jax.random.normal(
        kx, (NUM_HEROES, batch, num_features_per_hero), jnp.float32)

    params = init_params(key, num_features_per_hero, num_labels)
    ref = reference_forward(hero_features, params)

    # exact f32 path (matches the PyTorch reference numerics)
    out_f32 = jax.block_until_ready(
        shared_hero_weights_ff(hero_features, params, compute_dtype=jnp.float32))
    assert out_f32.shape == (batch, num_labels)
    assert jnp.allclose(out_f32, ref, atol=1e-4, rtol=1e-4), "f32 mismatch vs reference"

    # default bf16 MXU path (f32 accumulation) -- production default, looser tolerance
    out_bf16 = jax.block_until_ready(shared_hero_weights_ff(hero_features, params))
    assert out_bf16.shape == (batch, num_labels)
    assert jnp.allclose(out_bf16, ref, atol=5e-2, rtol=5e-2), "bf16 mismatch vs reference"

    print("KERNEL_OK")
</pallas_src>

<mosaic_0001>
module attributes {stable_mosaic.version = 11 : i64} {
  func.func @_fused_kernel(%arg0: i32, %arg1: memref<10x8x32xf32, #tpu.memory_space<vmem>>, %arg2: memref<32x100xf32, #tpu.memory_space<vmem>>, %arg3: memref<1x100xf32, #tpu.memory_space<vmem>>, %arg4: memref<100x60xf32, #tpu.memory_space<vmem>>, %arg5: memref<1x60xf32, #tpu.memory_space<vmem>>, %arg6: memref<60x20xf32, #tpu.memory_space<vmem>>, %arg7: memref<1x20xf32, #tpu.memory_space<vmem>>, %arg8: memref<10x20x100xf32, #tpu.memory_space<vmem>>, %arg9: memref<1x100xf32, #tpu.memory_space<vmem>>, %arg10: memref<100x8xf32, #tpu.memory_space<vmem>>, %arg11: memref<1x8xf32, #tpu.memory_space<vmem>>, %arg12: memref<8x8xf32, #tpu.memory_space<vmem>>) attributes {dimension_semantics = [#tpu.dimension_semantics<parallel>], iteration_bounds = array<i64: 1>, scalar_prefetch = 0 : i64, scratch_operands = 0 : i64, tpu.core_type = #tpu.core_type<tc>, window_params = [{transform_indices = @transform_0, window_bounds = array<i64: 10, 8, 32>}, {pipeline_mode = #tpu.pipeline_mode<synchronous>, transform_indices = @transform_1, window_bounds = array<i64: 32, 100>}, {pipeline_mode = #tpu.pipeline_mode<synchronous>, transform_indices = @transform_2, window_bounds = array<i64: 1, 100>}, {pipeline_mode = #tpu.pipeline_mode<synchronous>, transform_indices = @transform_3, window_bounds = array<i64: 100, 60>}, {pipeline_mode = #tpu.pipeline_mode<synchronous>, transform_indices = @transform_4, window_bounds = array<i64: 1, 60>}, {pipeline_mode = #tpu.pipeline_mode<synchronous>, transform_indices = @transform_5, window_bounds = array<i64: 60, 20>}, {pipeline_mode = #tpu.pipeline_mode<synchronous>, transform_indices = @transform_6, window_bounds = array<i64: 1, 20>}, {pipeline_mode = #tpu.pipeline_mode<synchronous>, transform_indices = @transform_7, window_bounds = array<i64: 10, 20, 100>}, {pipeline_mode = #tpu.pipeline_mode<synchronous>, transform_indices = @transform_8, window_bounds = array<i64: 1, 100>}, {pipeline_mode = #tpu.pipeline_mode<synchronous>, transform_indices = @transform_9, window_bounds = array<i64: 100, 8>}, {pipeline_mode = #tpu.pipeline_mode<synchronous>, transform_indices = @transform_10, window_bounds = array<i64: 1, 8>}, {transform_indices = @transform_11, window_bounds = array<i64: 8, 8>}]} {
    %c0 = arith.constant 0 : index
    %c0_0 = arith.constant 0 : index
    %c0_1 = arith.constant 0 : index
    %0 = vector.load %arg1[%c0, %c0_0, %c0_1] : memref<10x8x32xf32, #tpu.memory_space<vmem>>, vector<10x8x32xf32>
    %1 = vector.shape_cast %0 : vector<10x8x32xf32> to vector<80x32xf32>
    %c0_2 = arith.constant 0 : index
    %c0_3 = arith.constant 0 : index
    %2 = vector.load %arg2[%c0_2, %c0_3] : memref<32x100xf32, #tpu.memory_space<vmem>>, vector<32x100xf32>
    %cst = arith.constant dense<0.000000e+00> : vector<80x100xf32>
    %3 = tpu.matmul %1, %2, %cst {dimension_numbers = #tpu.dot_dimension_numbers<[1], [0], [0], [1], [0, 0, 1, 1], [], []>} : vector<80x32xf32>, vector<32x100xf32>, vector<80x100xf32> -> vector<80x100xf32>
    %c0_4 = arith.constant 0 : index
    %c0_5 = arith.constant 0 : index
    %4 = vector.load %arg3[%c0_4, %c0_5] : memref<1x100xf32, #tpu.memory_space<vmem>>, vector<1x100xf32>
    %5 = vector.broadcast %4 : vector<1x100xf32> to vector<80x100xf32>
    %6 = arith.addf %3, %5 : vector<80x100xf32>
    %cst_6 = arith.constant 0.000000e+00 : f32
    %7 = vector.broadcast %cst_6 : f32 to vector<80x100xf32>
    %8 = arith.maximumf %6, %7 : vector<80x100xf32>
    %c0_7 = arith.constant 0 : index
    %c0_8 = arith.constant 0 : index
    %9 = vector.load %arg4[%c0_7, %c0_8] : memref<100x60xf32, #tpu.memory_space<vmem>>, vector<100x60xf32>
    %cst_9 = arith.constant dense<0.000000e+00> : vector<80x60xf32>
    %10 = tpu.matmul %8, %9, %cst_9 {dimension_numbers = #tpu.dot_dimension_numbers<[1], [0], [0], [1], [0, 0, 1, 1], [], []>} : vector<80x100xf32>, vector<100x60xf32>, vector<80x60xf32> -> vector<80x60xf32>
    %c0_10 = arith.constant 0 : index
    %c0_11 = arith.constant 0 : index
    %11 = vector.load %arg5[%c0_10, %c0_11] : memref<1x60xf32, #tpu.memory_space<vmem>>, vector<1x60xf32>
    %12 = vector.broadcast %11 : vector<1x60xf32> to vector<80x60xf32>
    %13 = arith.addf %10, %12 : vector<80x60xf32>
    %cst_12 = arith.constant 0.000000e+00 : f32
    %14 = vector.broadcast %cst_12 : f32 to vector<80x60xf32>
    %15 = arith.maximumf %13, %14 : vector<80x60xf32>
    %c0_13 = arith.constant 0 : index
    %c0_14 = arith.constant 0 : index
    %16 = vector.load %arg6[%c0_13, %c0_14] : memref<60x20xf32, #tpu.memory_space<vmem>>, vector<60x20xf32>
    %cst_15 = arith.constant dense<0.000000e+00> : vector<80x20xf32>
    %17 = tpu.matmul %15, %16, %cst_15 {dimension_numbers = #tpu.dot_dimension_numbers<[1], [0], [0], [1], [0, 0, 1, 1], [], []>} : vector<80x60xf32>, vector<60x20xf32>, vector<80x20xf32> -> vector<80x20xf32>
    %c0_16 = arith.constant 0 : index
    %c0_17 = arith.constant 0 : index
    %18 = vector.load %arg7[%c0_16, %c0_17] : memref<1x20xf32, #tpu.memory_space<vmem>>, vector<1x20xf32>
    %19 = vector.broadcast %18 : vector<1x20xf32> to vector<80x20xf32>
    %20 = arith.addf %17, %19 : vector<80x20xf32>
    %cst_18 = arith.constant 0.000000e+00 : f32
    %21 = vector.broadcast %cst_18 : f32 to vector<80x20xf32>
    %22 = arith.maximumf %20, %21 : vector<80x20xf32>
    %23 = vector.shape_cast %22 : vector<80x20xf32> to vector<10x8x20xf32>
    %c0_19 = arith.constant 0 : index
    %c0_20 = arith.constant 0 : index
    %c0_21 = arith.constant 0 : index
    %24 = vector.load %arg8[%c0_19, %c0_20, %c0_21] : memref<10x20x100xf32, #tpu.memory_space<vmem>>, vector<10x20x100xf32>
    "tpu.trace_start"() <{level = 10 : i32, message = "hbd,hdn->hbn"}> : () -> ()
    %cst_22 = arith.constant dense<0.000000e+00> : vector<10x8x100xf32>
    %25 = tpu.matmul %23, %24, %cst_22 {dimension_numbers = #tpu.dot_dimension_numbers<[2], [1], [1], [2], [0, 0, 0, 1, 1, 2], [0], [0]>} : vector<10x8x20xf32>, vector<10x20x100xf32>, vector<10x8x100xf32> -> vector<10x8x100xf32>
    "tpu.trace_stop"() : () -> ()
    %cst_23 = arith.constant dense<0.000000e+00> : vector<8x100xf32>
    %26 = vector.multi_reduction <add>, %25, %cst_23 [0] : vector<10x8x100xf32> to vector<8x100xf32>
    %c0_24 = arith.constant 0 : index
    %c0_25 = arith.constant 0 : index
    %27 = vector.load %arg9[%c0_24, %c0_25] : memref<1x100xf32, #tpu.memory_space<vmem>>, vector<1x100xf32>
    %28 = vector.broadcast %27 : vector<1x100xf32> to vector<8x100xf32>
    %29 = arith.addf %26, %28 : vector<8x100xf32>
    %cst_26 = arith.constant 0.000000e+00 : f32
    %30 = vector.broadcast %cst_26 : f32 to vector<8x100xf32>
    %31 = arith.maximumf %29, %30 : vector<8x100xf32>
    %c0_27 = arith.constant 0 : index
    %c0_28 = arith.constant 0 : index
    %32 = vector.load %arg10[%c0_27, %c0_28] : memref<100x8xf32, #tpu.memory_space<vmem>>, vector<100x8xf32>
    %cst_29 = arith.constant dense<0.000000e+00> : vector<8x8xf32>
    %33 = tpu.matmul %31, %32, %cst_29 {dimension_numbers = #tpu.dot_dimension_numbers<[1], [0], [0], [1], [0, 0, 1, 1], [], []>} : vector<8x100xf32>, vector<100x8xf32>, vector<8x8xf32> -> vector<8x8xf32>
    %c0_30 = arith.constant 0 : index
    %c0_31 = arith.constant 0 : index
    %34 = vector.load %arg11[%c0_30, %c0_31] : memref<1x8xf32, #tpu.memory_space<vmem>>, vector<1x8xf32>
    %35 = vector.broadcast %34 : vector<1x8xf32> to vector<8x8xf32>
    %36 = arith.addf %33, %35 : vector<8x8xf32>
    %c0_32 = arith.constant 0 : index
    %c0_33 = arith.constant 0 : index
    %37 = vector.load %arg12[%c0_32, %c0_33] : memref<8x8xf32, #tpu.memory_space<vmem>>, vector<8x8xf32>
    tpu.vector_store %arg12[%c0_32, %c0_33], %36 {strides = array<i32>} : memref<8x8xf32, #tpu.memory_space<vmem>>, vector<8x8xf32>,
    return
  }
  func.func @transform_0(%arg0: i32) -> (i32, i32, i32) {
    %c0_i32 = arith.constant 0 : i32
    %c0_i32_0 = arith.constant 0 : i32
    %c0_i32_1 = arith.constant 0 : i32
    return %c0_i32, %arg0, %c0_i32_0 : i32, i32, i32
  }
  func.func @transform_1(%arg0: i32) -> (i32, i32) {
    %c0_i32 = arith.constant 0 : i32
    %c0_i32_0 = arith.constant 0 : i32
    %c0_i32_1 = arith.constant 0 : i32
    return %c0_i32, %c0_i32_0 : i32, i32
  }
  func.func @transform_2(%arg0: i32) -> (i32, i32) {
    %c0_i32 = arith.constant 0 : i32
    %c0_i32_0 = arith.constant 0 : i32
    %c0_i32_1 = arith.constant 0 : i32
    return %c0_i32, %c0_i32_0 : i32, i32
  }
  func.func @transform_3(%arg0: i32) -> (i32, i32) {
    %c0_i32 = arith.constant 0 : i32
    %c0_i32_0 = arith.constant 0 : i32
    %c0_i32_1 = arith.constant 0 : i32
    return %c0_i32, %c0_i32_0 : i32, i32
  }
  func.func @transform_4(%arg0: i32) -> (i32, i32) {
    %c0_i32 = arith.constant 0 : i32
    %c0_i32_0 = arith.constant 0 : i32
    %c0_i32_1 = arith.constant 0 : i32
    return %c0_i32, %c0_i32_0 : i32, i32
  }
  func.func @transform_5(%arg0: i32) -> (i32, i32) {
    %c0_i32 = arith.constant 0 : i32
    %c0_i32_0 = arith.constant 0 : i32
    %c0_i32_1 = arith.constant 0 : i32
    return %c0_i32, %c0_i32_0 : i32, i32
  }
  func.func @transform_6(%arg0: i32) -> (i32, i32) {
    %c0_i32 = arith.constant 0 : i32
    %c0_i32_0 = arith.constant 0 : i32
    %c0_i32_1 = arith.constant 0 : i32
    return %c0_i32, %c0_i32_0 : i32, i32
  }
  func.func @transform_7(%arg0: i32) -> (i32, i32, i32) {
    %c0_i32 = arith.constant 0 : i32
    %c0_i32_0 = arith.constant 0 : i32
    %c0_i32_1 = arith.constant 0 : i32
    %c0_i32_2 = arith.constant 0 : i32
    return %c0_i32, %c0_i32_0, %c0_i32_1 : i32, i32, i32
  }
  func.func @transform_8(%arg0: i32) -> (i32, i32) {
    %c0_i32 = arith.constant 0 : i32
    %c0_i32_0 = arith.constant 0 : i32
    %c0_i32_1 = arith.constant 0 : i32
    return %c0_i32, %c0_i32_0 : i32, i32
  }
  func.func @transform_9(%arg0: i32) -> (i32, i32) {
    %c0_i32 = arith.constant 0 : i32
    %c0_i32_0 = arith.constant 0 : i32
    %c0_i32_1 = arith.constant 0 : i32
    return %c0_i32, %c0_i32_0 : i32, i32
  }
  func.func @transform_10(%arg0: i32) -> (i32, i32) {
    %c0_i32 = arith.constant 0 : i32
    %c0_i32_0 = arith.constant 0 : i32
    %c0_i32_1 = arith.constant 0 : i32
    return %c0_i32, %c0_i32_0 : i32, i32
  }
  func.func @transform_11(%arg0: i32) -> (i32, i32) {
    %c0_i32 = arith.constant 0 : i32
    %c0_i32_0 = arith.constant 0 : i32
    return %arg0, %c0_i32 : i32, i32
  }
}

</mosaic_0001>

<llo_original>
// kernel: tpu_custom_call.1
$region0: #{tpu_custom_call.1}
  #allocation0 [shape = 'u32[]', space=smem, size = 0x4, offset = 0x4, fixed_abs, tag = 'smem constant byte address 0x4 - core index']
  #allocation1 [shape = 'u32[72,128]{1,0:T(1,128)}', space=vmem, size = 0x9000, scoped, tag = 'internal scratch']
  %s0 = inlined_call_operand.vmem [shape: f32[10,8,32], index: 0, kind: input, shape index: {}]
  %s1 = inlined_call_operand.vmem [shape: f32[32,100], index: 1, kind: input, shape index: {}]
  %s2 = inlined_call_operand.vmem [shape: f32[1,100], index: 2, kind: input, shape index: {}]
  %s3 = inlined_call_operand.vmem [shape: f32[100,60], index: 3, kind: input, shape index: {}]
  %s4 = inlined_call_operand.vmem [shape: f32[1,60], index: 4, kind: input, shape index: {}]
  %s5 = inlined_call_operand.vmem [shape: f32[60,20], index: 5, kind: input, shape index: {}]
  %s6 = inlined_call_operand.vmem [shape: f32[1,20], index: 6, kind: input, shape index: {}]
  %s7 = inlined_call_operand.vmem [shape: f32[10,20,100], index: 7, kind: input, shape index: {}]
  %s8 = inlined_call_operand.vmem [shape: f32[1,100], index: 8, kind: input, shape index: {}]
  %s9 = inlined_call_operand.vmem [shape: f32[100,8], index: 9, kind: input, shape index: {}]
  %s10 = inlined_call_operand.vmem [shape: f32[1,8], index: 10, kind: input, shape index: {}]
  %s11 = inlined_call_operand.hbm [shape: f32[8,8], index: 11, kind: output, shape index: {}]
  %s12 = sld [smem:[#allocation0]]
  $region54: #{tpu_custom_call.1} parent=0
    _
  %s14 = ssub.s32 1, %s12
  %s15 = scalar_select 0, %s14, %s12
  $region1: #{tpu_custom_call.1} parent=0
    #allocation2 [shape = 'u8[4096]{0}', space=vmem, size = 0x1000, scoped, tag = 'output window, operand 0, single buffered']
    #allocation3 [shape = 's32[1]{0}', space=sflag, size = 0x4, scoped, tag = 'scoped memory for tpu_custom_call.1']
    %16 = vsyncpa [#allocation3], 0
    // Predicated region
    $region2: #{tpu_custom_call.1} parent=1 // pred_check
      _
    $region3: #{tpu_custom_call.1} parent=1 // pred_check_branch
      %18 = sbr.rel (0) target = $region5
    $region4: #{tpu_custom_call.1} parent=1 // pred_region
      _
    $region5: #{tpu_custom_call.1} parent=1 // pred_fallthru
      _
    // Predicated region
    $region6: #{tpu_custom_call.1} parent=1 // pred_check
      _
    $region7: #{tpu_custom_call.1} parent=1 // pred_check_branch
      %20 = sbr.rel (0) target = $region9
    $region8: #{tpu_custom_call.1} parent=1 // pred_region
      _
    $region9: #{tpu_custom_call.1} parent=1 // pred_fallthru
      _
    // Predicated region
    $region10: #{tpu_custom_call.1} parent=1 // pred_check
      _
    $region11: #{tpu_custom_call.1} parent=1 // pred_check_branch
      %22 = sbr.rel (0) target = $region13
    $region12: #{tpu_custom_call.1} parent=1 // pred_region
      _
    $region13: #{tpu_custom_call.1} parent=1 // pred_fallthru
      _
    // Predicated region
    $region14: #{tpu_custom_call.1} parent=1 // pred_check
      _
    $region15: #{tpu_custom_call.1} parent=1 // pred_check_branch
      %24 = sbr.rel (0) target = $region17
    $region16: #{tpu_custom_call.1} parent=1 // pred_region
      _
    $region17: #{tpu_custom_call.1} parent=1 // pred_fallthru
      _
    // Predicated region
    $region18: #{tpu_custom_call.1} parent=1 // pred_check
      _
    $region19: #{tpu_custom_call.1} parent=1 // pred_check_branch
      %26 = sbr.rel (0) target = $region21
    $region20: #{tpu_custom_call.1} parent=1 // pred_region
      _
    $region21: #{tpu_custom_call.1} parent=1 // pred_fallthru
      _
    // Predicated region
    $region22: #{tpu_custom_call.1} parent=1 // pred_check
      _
    $region23: #{tpu_custom_call.1} parent=1 // pred_check_branch
      %28 = sbr.rel (0) target = $region25
    $region24: #{tpu_custom_call.1} parent=1 // pred_region
      _
    $region25: #{tpu_custom_call.1} parent=1 // pred_fallthru
      _
    // Predicated region
    $region26: #{tpu_custom_call.1} parent=1 // pred_check
      _
    $region27: #{tpu_custom_call.1} parent=1 // pred_check_branch
      %30 = sbr.rel (0) target = $region29
    $region28: #{tpu_custom_call.1} parent=1 // pred_region
      _
    $region29: #{tpu_custom_call.1} parent=1 // pred_fallthru
      _
    // Predicated region
    $region30: #{tpu_custom_call.1} parent=1 // pred_check
      _
    $region31: #{tpu_custom_call.1} parent=1 // pred_check_branch
      %32 = sbr.rel (0) target = $region33
    $region32: #{tpu_custom_call.1} parent=1 // pred_region
      _
    $region33: #{tpu_custom_call.1} parent=1 // pred_fallthru
      _
    // Predicated region
    $region34: #{tpu_custom_call.1} parent=1 // pred_check
      _
    $region35: #{tpu_custom_call.1} parent=1 // pred_check_branch
      %34 = sbr.rel (0) target = $region37
    $region36: #{tpu_custom_call.1} parent=1 // pred_region
      _
    $region37: #{tpu_custom_call.1} parent=1 // pred_fallthru
      _
    // Predicated region
    $region38: #{tpu_custom_call.1} parent=1 // pred_check
      _
    $region39: #{tpu_custom_call.1} parent=1 // pred_check_branch
      %36 = sbr.rel (0) target = $region41
    $region40: #{tpu_custom_call.1} parent=1 // pred_region
      _
    $region41: #{tpu_custom_call.1} parent=1 // pred_fallthru
      _
    // Predicated region
    $region42: #{tpu_custom_call.1} parent=1 // pred_check
      _
    $region43: #{tpu_custom_call.1} parent=1 // pred_check_branch
      %38 = sbr.rel (0) target = $region45
    $region44: #{tpu_custom_call.1} parent=1 // pred_region
      _
    $region45: #{tpu_custom_call.1} parent=1 // pred_fallthru
      _
    %v39 = vld [vmem:[%s0] sm:$0xff]
    %v40 = vld [vmem:[%s0 + $0x8] sm:$0xff]
    %v41 = vld [vmem:[%s0 + $0x10] sm:$0xff]
    %v42 = vld [vmem:[%s0 + $0x18] sm:$0xff]
    %v43 = vld [vmem:[%s0 + $0x20] sm:$0xff]
    %v44 = vld [vmem:[%s0 + $0x28] sm:$0xff]
    %v45 = vld [vmem:[%s0 + $0x30] sm:$0xff]
    %v46 = vld [vmem:[%s0 + $0x38] sm:$0xff]
    %v47 = vld [vmem:[%s0 + $0x40] sm:$0xff]
    %v48 = vld [vmem:[%s0 + $0x48] sm:$0xff]
    %v49 = vld [vmem:[%s1] sm:$0xff]
    %v50 = vld [vmem:[%s1 + $0x8] sm:$0xff]
    %v51 = vld [vmem:[%s1 + $0x10] sm:$0xff]
    %v52 = vld [vmem:[%s1 + $0x18] sm:$0xff]
    %v53 = vld [vmem:[%s2] sm:$0x1]
    %v55 = vperm.slane %v53, 0
    %vm57 = vcmask 261120
    %v59 = vsel %vm57, %v39, 0
    %v62 = vsel %vm57, %v40, 0
    %v65 = vsel %vm57, %v41, 0
    %v68 = vsel %vm57, %v42, 0
    %v71 = vsel %vm57, %v43, 0
    %v74 = vsel %vm57, %v44, 0
    %v77 = vsel %vm57, %v45, 0
    %v80 = vsel %vm57, %v46, 0
    %v83 = vsel %vm57, %v47, 0
    %v86 = vsel %vm57, %v48, 0
    %88 = vmatpush.msra.mxu0 0.0
    %89 = vmatpush.msra.mxu0 0.0
    %90 = vmatpush.msra.mxu0 0.0
    %91 = vmatpush.msra.mxu0 0.0
    %92 = vmatpush.msra.mxu0 0.0
    %93 = vmatpush.msra.mxu0 0.0
    %94 = vmatpush.msra.mxu0 0.0
    %95 = vmatpush.msra.mxu0 0.0
    %96 = vmatpush.msra.mxu0 0.0
    %97 = vmatpush.msra.mxu0 0.0
    %98 = vmatpush.msra.mxu0 0.0
    %99 = vmatpush.msra.mxu0 0.0
    %100 = vmatpush.msra.mxu0 %v52
    %101 = vmatpush.msra.mxu0 %v51
    %102 = vmatpush.msra.mxu0 %v50
    %103 = vmatpush.msra.mxu0 %v49
    %104 = vmatmul.f32.gmra.mxu0 %v59
    %v105 = vpop.f32.mrf.mxu0
    %v106 = vadd.f32 %v55, %v105
    %107 = vmatmul.f32.gmra.mxu0 %v62
    %v108 = vpop.f32.mrf.mxu0
    %v109 = vadd.f32 %v55, %v108
    %110 = vmatmul.f32.gmra.mxu0 %v65
    %v111 = vpop.f32.mrf.mxu0
    %v112 = vadd.f32 %v55, %v111
    %113 = vmatmul.f32.gmra.mxu0 %v68
    %v114 = vpop.f32.mrf.mxu0
    %v115 = vadd.f32 %v55, %v114
    %116 = vmatmul.f32.gmra.mxu0 %v71
    %v117 = vpop.f32.mrf.mxu0
    %v118 = vadd.f32 %v55, %v117
    %119 = vmatmul.f32.gmra.mxu0 %v74
    %v120 = vpop.f32.mrf.mxu0
    %v121 = vadd.f32 %v55, %v120
    %122 = vmatmul.f32.gmra.mxu0 %v77
    %v123 = vpop.f32.mrf.mxu0
    %v124 = vadd.f32 %v55, %v123
    %125 = vmatmul.f32.gmra.mxu0 %v80
    %v126 = vpop.f32.mrf.mxu0
    %v127 = vadd.f32 %v55, %v126
    %128 = vmatmul.f32.gmra.mxu0 %v83
    %v129 = vpop.f32.mrf.mxu0
    %v130 = vadd.f32 %v55, %v129
    %131 = vmatmul.f32.gmra.mxu0 %v86
    %v132 = vpop.f32.mrf.mxu0
    %v133 = vadd.f32 %v55, %v132
    %134 = vdwg.mxu0
    %v135 = vmax.f32 %v106, 0.0
    %v136 = vmax.f32 %v109, 0.0
    %v137 = vmax.f32 %v112, 0.0
    %v138 = vmax.f32 %v115, 0.0
    %v139 = vmax.f32 %v118, 0.0
    %v140 = vmax.f32 %v121, 0.0
    %v141 = vmax.f32 %v124, 0.0
    %v142 = vmax.f32 %v127, 0.0
    %v143 = vmax.f32 %v130, 0.0
    %v144 = vmax.f32 %v133, 0.0
    %v145 = vld [vmem:[%s3] sm:$0xff]
    %v146 = vld [vmem:[%s3 + $0x8] sm:$0xff]
    %v147 = vld [vmem:[%s3 + $0x10] sm:$0xff]
    %v148 = vld [vmem:[%s3 + $0x18] sm:$0xff]
    %v149 = vld [vmem:[%s3 + $0x20] sm:$0xff]
    %v150 = vld [vmem:[%s3 + $0x28] sm:$0xff]
    %v151 = vld [vmem:[%s3 + $0x30] sm:$0xff]
    %v152 = vld [vmem:[%s3 + $0x38] sm:$0xff]
    %v153 = vld [vmem:[%s3 + $0x40] sm:$0xff]
    %v154 = vld [vmem:[%s3 + $0x48] sm:$0xff]
    %v155 = vld [vmem:[%s3 + $0x50] sm:$0xff]
    %v156 = vld [vmem:[%s3 + $0x58] sm:$0xff]
    %v157 = vld [vmem:[%s3 + $0x60] sm:$0xf]
    %v158 = vld [vmem:[%s4] sm:$0x1]
    %v160 = vperm.slane %v158, 0
    %vm162 = vcmask 818176
    %v164 = vsel %vm162, %v135, 0
    %v167 = vsel %vm162, %v136, 0
    %v170 = vsel %vm162, %v137, 0
    %v173 = vsel %vm162, %v138, 0
    %v176 = vsel %vm162, %v139, 0
    %v179 = vsel %vm162, %v140, 0
    %v182 = vsel %vm162, %v141, 0
    %v185 = vsel %vm162, %v142, 0
    %v188 = vsel %vm162, %v143, 0
    %v191 = vsel %vm162, %v144, 0
    %vm193 = vcmask 1043456
    %v195 = vsel %vm193, %v157, 0
    %197 = vmatpush.msra.mxu0 0.0
    %198 = vmatpush.msra.mxu0 0.0
    %199 = vmatpush.msra.mxu0 0.0
    %200 = vmatpush.msra.mxu0 %v195
    %201 = vmatpush.msra.mxu0 %v156
    %202 = vmatpush.msra.mxu0 %v155
    %203 = vmatpush.msra.mxu0 %v154
    %204 = vmatpush.msra.mxu0 %v153
    %205 = vmatpush.msra.mxu0 %v152
    %206 = vmatpush.msra.mxu0 %v151
    %207 = vmatpush.msra.mxu0 %v150
    %208 = vmatpush.msra.mxu0 %v149
    %209 = vmatpush.msra.mxu0 %v148
    %210 = vmatpush.msra.mxu0 %v147
    %211 = vmatpush.msra.mxu0 %v146
    %212 = vmatpush.msra.mxu0 %v145
    %213 = vmatmul.f32.gmra.mxu0 %v164
    %v214 = vpop.f32.mrf.mxu0
    %v215 = vadd.f32 %v160, %v214
    %216 = vmatmul.f32.gmra.mxu0 %v167
    %v217 = vpop.f32.mrf.mxu0
    %v218 = vadd.f32 %v160, %v217
    %219 = vmatmul.f32.gmra.mxu0 %v170
    %v220 = vpop.f32.mrf.mxu0
    %v221 = vadd.f32 %v160, %v220
    %222 = vmatmul.f32.gmra.mxu0 %v173
    %v223 = vpop.f32.mrf.mxu0
    %v224 = vadd.f32 %v160, %v223
    %225 = vmatmul.f32.gmra.mxu0 %v176
    %v226 = vpop.f32.mrf.mxu0
    %v227 = vadd.f32 %v160, %v226
    %228 = vmatmul.f32.gmra.mxu0 %v179
    %v229 = vpop.f32.mrf.mxu0
    %v230 = vadd.f32 %v160, %v229
    %231 = vmatmul.f32.gmra.mxu0 %v182
    %v232 = vpop.f32.mrf.mxu0
    %v233 = vadd.f32 %v160, %v232
    %234 = vmatmul.f32.gmra.mxu0 %v185
    %v235 = vpop.f32.mrf.mxu0
    %v236 = vadd.f32 %v160, %v235
    %237 = vmatmul.f32.gmra.mxu0 %v188
    %v238 = vpop.f32.mrf.mxu0
    %v239 = vadd.f32 %v160, %v238
    %240 = vmatmul.f32.gmra.mxu0 %v191
    %v241 = vpop.f32.mrf.mxu0
    %v242 = vadd.f32 %v160, %v241
    %243 = vdwg.mxu0
    %v244 = vmax.f32 %v215, 0.0
    %v245 = vmax.f32 %v218, 0.0
    %v246 = vmax.f32 %v221, 0.0
    %v247 = vmax.f32 %v224, 0.0
    %v248 = vmax.f32 %v227, 0.0
    %v249 = vmax.f32 %v230, 0.0
    %v250 = vmax.f32 %v233, 0.0
    %v251 = vmax.f32 %v236, 0.0
    %v252 = vmax.f32 %v239, 0.0
    %v253 = vmax.f32 %v242, 0.0
    %v254 = vld [vmem:[%s5] sm:$0xff]
    %v255 = vld [vmem:[%s5 + $0x8] sm:$0xff]
    %v256 = vld [vmem:[%s5 + $0x10] sm:$0xff]
    %v257 = vld [vmem:[%s5 + $0x18] sm:$0xff]
    %v258 = vld [vmem:[%s5 + $0x20] sm:$0xff]
    %v259 = vld [vmem:[%s5 + $0x28] sm:$0xff]
    %v260 = vld [vmem:[%s5 + $0x30] sm:$0xff]
    %v261 = vld [vmem:[%s5 + $0x38] sm:$0xf]
    %v262 = vld [vmem:[%s6] sm:$0x1]
    %v264 = vperm.slane %v262, 0
    %vm266 = vcmask 490496
    %v268 = vsel %vm266, %v244, 0
    %v271 = vsel %vm266, %v245, 0
    %v274 = vsel %vm266, %v246, 0
    %v277 = vsel %vm266, %v247, 0
    %v280 = vsel %vm266, %v248, 0
    %v283 = vsel %vm266, %v249, 0
    %v286 = vsel %vm266, %v250, 0
    %v289 = vsel %vm266, %v251, 0
    %v292 = vsel %vm266, %v252, 0
    %v295 = vsel %vm266, %v253, 0
    %v298 = vsel %vm193, %v261, 0
    %300 = vmatpush.msra.mxu0 0.0
    %301 = vmatpush.msra.mxu0 0.0
    %302 = vmatpush.msra.mxu0 0.0
    %303 = vmatpush.msra.mxu0 0.0
    %304 = vmatpush.msra.mxu0 0.0
    %305 = vmatpush.msra.mxu0 0.0
    %306 = vmatpush.msra.mxu0 0.0
    %307 = vmatpush.msra.mxu0 0.0
    %308 = vmatpush.msra.mxu0 %v298
    %309 = vmatpush.msra.mxu0 %v260
    %310 = vmatpush.msra.mxu0 %v259
    %311 = vmatpush.msra.mxu0 %v258
    %312 = vmatpush.msra.mxu0 %v257
    %313 = vmatpush.msra.mxu0 %v256
    %314 = vmatpush.msra.mxu0 %v255
    %315 = vmatpush.msra.mxu0 %v254
    %316 = vmatmul.f32.gmra.mxu0 %v268
    %v317 = vpop.f32.mrf.mxu0
    %v318 = vadd.f32 %v264, %v317
    %319 = vmatmul.f32.gmra.mxu0 %v271
    %v320 = vpop.f32.mrf.mxu0
    %v321 = vadd.f32 %v264, %v320
    %322 = vmatmul.f32.gmra.mxu0 %v274
    %v323 = vpop.f32.mrf.mxu0
    %v324 = vadd.f32 %v264, %v323
    %325 = vmatmul.f32.gmra.mxu0 %v277
    %v326 = vpop.f32.mrf.mxu0
    %v327 = vadd.f32 %v264, %v326
    %328 = vmatmul.f32.gmra.mxu0 %v280
    %v329 = vpop.f32.mrf.mxu0
    %v330 = vadd.f32 %v264, %v329
    %331 = vmatmul.f32.gmra.mxu0 %v283
    %v332 = vpop.f32.mrf.mxu0
    %v333 = vadd.f32 %v264, %v332
    %334 = vmatmul.f32.gmra.mxu0 %v286
    %v335 = vpop.f32.mrf.mxu0
    %v336 = vadd.f32 %v264, %v335
    %337 = vmatmul.f32.gmra.mxu0 %v289
    %v338 = vpop.f32.mrf.mxu0
    %v339 = vadd.f32 %v264, %v338
    %340 = vmatmul.f32.gmra.mxu0 %v292
    %v341 = vpop.f32.mrf.mxu0
    %v342 = vadd.f32 %v264, %v341
    %343 = vmatmul.f32.gmra.mxu0 %v295
    %v344 = vpop.f32.mrf.mxu0
    %v345 = vadd.f32 %v264, %v344
    %346 = vdwg.mxu0
    %v347 = vmax.f32 %v318, 0.0
    %v348 = vmax.f32 %v321, 0.0
    %v349 = vmax.f32 %v324, 0.0
    %v350 = vmax.f32 %v327, 0.0
    %v351 = vmax.f32 %v330, 0.0
    %v352 = vmax.f32 %v333, 0.0
    %v353 = vmax.f32 %v336, 0.0
    %v354 = vmax.f32 %v339, 0.0
    %v355 = vmax.f32 %v342, 0.0
    %v356 = vmax.f32 %v345, 0.0
    %v357 = vld [vmem:[%s7] sm:$0xff]
    %v358 = vld [vmem:[%s7 + $0x8] sm:$0xff]
    %v359 = vld [vmem:[%s7 + $0x10] sm:$0xf]
    %v360 = vld [vmem:[%s7 + $0x18] sm:$0xff]
    %v361 = vld [vmem:[%s7 + $0x20] sm:$0xff]
    %v362 = vld [vmem:[%s7 + $0x28] sm:$0xf]
    %v363 = vld [vmem:[%s7 + $0x30] sm:$0xff]
    %v364 = vld [vmem:[%s7 + $0x38] sm:$0xff]
    %v365 = vld [vmem:[%s7 + $0x40] sm:$0xf]
    %v366 = vld [vmem:[%s7 + $0x48] sm:$0xff]
    %v367 = vld [vmem:[%s7 + $0x50] sm:$0xff]
    %v368 = vld [vmem:[%s7 + $0x58] sm:$0xf]
    %v369 = vld [vmem:[%s7 + $0x60] sm:$0xff]
    %v370 = vld [vmem:[%s7 + $0x68] sm:$0xff]
    %v371 = vld [vmem:[%s7 + $0x70] sm:$0xf]
    %v372 = vld [vmem:[%s7 + $0x78] sm:$0xff]
    %v373 = vld [vmem:[%s7 + $0x80] sm:$0xff]
    %v374 = vld [vmem:[%s7 + $0x88] sm:$0xf]
    %v375 = vld [vmem:[%s7 + $0x90] sm:$0xff]
    %v376 = vld [vmem:[%s7 + $0x98] sm:$0xff]
    %v377 = vld [vmem:[%s7 + $0xa0] sm:$0xf]
    %v378 = vld [vmem:[%s7 + $0xa8] sm:$0xff]
    %v379 = vld [vmem:[%s7 + $0xb0] sm:$0xff]
    %v380 = vld [vmem:[%s7 + $0xb8] sm:$0xf]
    %v381 = vld [vmem:[%s7 + $0xc0] sm:$0xff]
    %v382 = vld [vmem:[%s7 + $0xc8] sm:$0xff]
    %v383 = vld [vmem:[%s7 + $0xd0] sm:$0xf]
    %v384 = vld [vmem:[%s7 + $0xd8] sm:$0xff]
    %v385 = vld [vmem:[%s7 + $0xe0] sm:$0xff]
    %v386 = vld [vmem:[%s7 + $0xe8] sm:$0xf]
    %vm387 = vcmask 162816
    %v389 = vsel %vm387, %v347, 0
    %v392 = vsel %vm193, %v359, 0
    %394 = vmatpush.msra.mxu0 0.0
    %395 = vmatpush.msra.mxu0 0.0
    %396 = vmatpush.msra.mxu0 0.0
    %397 = vmatpush.msra.mxu0 0.0
    %398 = vmatpush.msra.mxu0 0.0
    %399 = vmatpush.msra.mxu0 0.0
    %400 = vmatpush.msra.mxu0 0.0
    %401 = vmatpush.msra.mxu0 0.0
    %402 = vmatpush.msra.mxu0 0.0
    %403 = vmatpush.msra.mxu0 0.0
    %404 = vmatpush.msra.mxu0 0.0
    %405 = vmatpush.msra.mxu0 0.0
    %406 = vmatpush.msra.mxu0 0.0
    %407 = vmatpush.msra.mxu0 %v392
    %408 = vmatpush.msra.mxu0 %v358
    %409 = vmatpush.msra.mxu0 %v357
    %410 = vmatmul.f32.gmra.mxu0 %v389
    %v411 = vpop.f32.mrf.mxu0
    %v412 = vadd.f32 0.0, %v411
    %413 = vdwg.mxu0
    %v415 = vsel %vm387, %v348, 0
    %v418 = vsel %vm193, %v362, 0
    %420 = vmatpush.msra.mxu0 0.0
    %421 = vmatpush.msra.mxu0 0.0
    %422 = vmatpush.msra.mxu0 0.0
    %423 = vmatpush.msra.mxu0 0.0
    %424 = vmatpush.msra.mxu0 0.0
    %425 = vmatpush.msra.mxu0 0.0
    %426 = vmatpush.msra.mxu0 0.0
    %427 = vmatpush.msra.mxu0 0.0
    %428 = vmatpush.msra.mxu0 0.0
    %429 = vmatpush.msra.mxu0 0.0
    %430 = vmatpush.msra.mxu0 0.0
    %431 = vmatpush.msra.mxu0 0.0
    %432 = vmatpush.msra.mxu0 0.0
    %433 = vmatpush.msra.mxu0 %v418
    %434 = vmatpush.msra.mxu0 %v361
    %435 = vmatpush.msra.mxu0 %v360
    %436 = vmatmul.f32.gmra.mxu0 %v415
    %v437 = vpop.f32.mrf.mxu0
    %v438 = vadd.f32 0.0, %v437
    %439 = vdwg.mxu0
    %v441 = vsel %vm387, %v349, 0
    %v444 = vsel %vm193, %v365, 0
    %446 = vmatpush.msra.mxu0 0.0
    %447 = vmatpush.msra.mxu0 0.0
    %448 = vmatpush.msra.mxu0 0.0
    %449 = vmatpush.msra.mxu0 0.0
    %450 = vmatpush.msra.mxu0 0.0
    %451 = vmatpush.msra.mxu0 0.0
    %452 = vmatpush.msra.mxu0 0.0
    %453 = vmatpush.msra.mxu0 0.0
    %454 = vmatpush.msra.mxu0 0.0
    %455 = vmatpush.msra.mxu0 0.0
    %456 = vmatpush.msra.mxu0 0.0
    %457 = vmatpush.msra.mxu0 0.0
    %458 = vmatpush.msra.mxu0 0.0
    %459 = vmatpush.msra.mxu0 %v444
    %460 = vmatpush.msra.mxu0 %v364
    %461 = vmatpush.msra.mxu0 %v363
    %462 = vmatmul.f32.gmra.mxu0 %v441
    %v463 = vpop.f32.mrf.mxu0
    %v464 = vadd.f32 0.0, %v463
    %465 = vdwg.mxu0
    %v467 = vsel %vm387, %v350, 0
    %v470 = vsel %vm193, %v368, 0
    %472 = vmatpush.msra.mxu0 0.0
    %473 = vmatpush.msra.mxu0 0.0
    %474 = vmatpush.msra.mxu0 0.0
    %475 = vmatpush.msra.mxu0 0.0
    %476 = vmatpush.msra.mxu0 0.0
    %477 = vmatpush.msra.mxu0 0.0
    %478 = vmatpush.msra.mxu0 0.0
    %479 = vmatpush.msra.mxu0 0.0
    %480 = vmatpush.msra.mxu0 0.0
    %481 = vmatpush.msra.mxu0 0.0
    %482 = vmatpush.msra.mxu0 0.0
    %483 = vmatpush.msra.mxu0 0.0
    %484 = vmatpush.msra.mxu0 0.0
    %485 = vmatpush.msra.mxu0 %v470
    %486 = vmatpush.msra.mxu0 %v367
    %487 = vmatpush.msra.mxu0 %v366
    %488 = vmatmul.f32.gmra.mxu0 %v467
    %v489 = vpop.f32.mrf.mxu0
    %v490 = vadd.f32 0.0, %v489
    %491 = vdwg.mxu0
    %v493 = vsel %vm387, %v351, 0
    %v496 = vsel %vm193, %v371, 0
    %498 = vmatpush.msra.mxu0 0.0
    %499 = vmatpush.msra.mxu0 0.0
    %500 = vmatpush.msra.mxu0 0.0
    %501 = vmatpush.msra.mxu0 0.0
    %502 = vmatpush.msra.mxu0 0.0
    %503 = vmatpush.msra.mxu0 0.0
    %504 = vmatpush.msra.mxu0 0.0
    %505 = vmatpush.msra.mxu0 0.0
    %506 = vmatpush.msra.mxu0 0.0
    %507 = vmatpush.msra.mxu0 0.0
    %508 = vmatpush.msra.mxu0 0.0
    %509 = vmatpush.msra.mxu0 0.0
    %510 = vmatpush.msra.mxu0 0.0
    %511 = vmatpush.msra.mxu0 %v496
    %512 = vmatpush.msra.mxu0 %v370
    %513 = vmatpush.msra.mxu0 %v369
    %514 = vmatmul.f32.gmra.mxu0 %v493
    %v515 = vpop.f32.mrf.mxu0
    %v516 = vadd.f32 0.0, %v515
    %517 = vdwg.mxu0
    %v519 = vsel %vm387, %v352, 0
    %v522 = vsel %vm193, %v374, 0
    %524 = vmatpush.msra.mxu0 0.0
    %525 = vmatpush.msra.mxu0 0.0
    %526 = vmatpush.msra.mxu0 0.0
    %527 = vmatpush.msra.mxu0 0.0
    %528 = vmatpush.msra.mxu0 0.0
    %529 = vmatpush.msra.mxu0 0.0
    %530 = vmatpush.msra.mxu0 0.0
    %531 = vmatpush.msra.mxu0 0.0
    %532 = vmatpush.msra.mxu0 0.0
    %533 = vmatpush.msra.mxu0 0.0
    %534 = vmatpush.msra.mxu0 0.0
    %535 = vmatpush.msra.mxu0 0.0
    %536 = vmatpush.msra.mxu0 0.0
    %537 = vmatpush.msra.mxu0 %v522
    %538 = vmatpush.msra.mxu0 %v373
    %539 = vmatpush.msra.mxu0 %v372
    %540 = vmatmul.f32.gmra.mxu0 %v519
    %v541 = vpop.f32.mrf.mxu0
    %v542 = vadd.f32 0.0, %v541
    %543 = vdwg.mxu0
    %v545 = vsel %vm387, %v353, 0
    %v548 = vsel %vm193, %v377, 0
    %550 = vmatpush.msra.mxu0 0.0
    %551 = vmatpush.msra.mxu0 0.0
    %552 = vmatpush.msra.mxu0 0.0
    %553 = vmatpush.msra.mxu0 0.0
    %554 = vmatpush.msra.mxu0 0.0
    %555 = vmatpush.msra.mxu0 0.0
    %556 = vmatpush.msra.mxu0 0.0
    %557 = vmatpush.msra.mxu0 0.0
    %558 = vmatpush.msra.mxu0 0.0
    %559 = vmatpush.msra.mxu0 0.0
    %560 = vmatpush.msra.mxu0 0.0
    %561 = vmatpush.msra.mxu0 0.0
    %562 = vmatpush.msra.mxu0 0.0
    %563 = vmatpush.msra.mxu0 %v548
    %564 = vmatpush.msra.mxu0 %v376
    %565 = vmatpush.msra.mxu0 %v375
    %566 = vmatmul.f32.gmra.mxu0 %v545
    %v567 = vpop.f32.mrf.mxu0
    %v568 = vadd.f32 0.0, %v567
    %569 = vdwg.mxu0
    %v571 = vsel %vm387, %v354, 0
    %v574 = vsel %vm193, %v380, 0
    %576 = vmatpush.msra.mxu0 0.0
    %577 = vmatpush.msra.mxu0 0.0
    %578 = vmatpush.msra.mxu0 0.0
    %579 = vmatpush.msra.mxu0 0.0
    %580 = vmatpush.msra.mxu0 0.0
    %581 = vmatpush.msra.mxu0 0.0
    %582 = vmatpush.msra.mxu0 0.0
    %583 = vmatpush.msra.mxu0 0.0
    %584 = vmatpush.msra.mxu0 0.0
    %585 = vmatpush.msra.mxu0 0.0
    %586 = vmatpush.msra.mxu0 0.0
    %587 = vmatpush.msra.mxu0 0.0
    %588 = vmatpush.msra.mxu0 0.0
    %589 = vmatpush.msra.mxu0 %v574
    %590 = vmatpush.msra.mxu0 %v379
    %591 = vmatpush.msra.mxu0 %v378
    %592 = vmatmul.f32.gmra.mxu0 %v571
    %v593 = vpop.f32.mrf.mxu0
    %v594 = vadd.f32 0.0, %v593
    %595 = vdwg.mxu0
    %v597 = vsel %vm387, %v355, 0
    %v600 = vsel %vm193, %v383, 0
    %602 = vmatpush.msra.mxu0 0.0
    %603 = vmatpush.msra.mxu0 0.0
    %604 = vmatpush.msra.mxu0 0.0
    %605 = vmatpush.msra.mxu0 0.0
    %606 = vmatpush.msra.mxu0 0.0
    %607 = vmatpush.msra.mxu0 0.0
    %608 = vmatpush.msra.mxu0 0.0
    %609 = vmatpush.msra.mxu0 0.0
    %610 = vmatpush.msra.mxu0 0.0
    %611 = vmatpush.msra.mxu0 0.0
    %612 = vmatpush.msra.mxu0 0.0
    %613 = vmatpush.msra.mxu0 0.0
    %614 = vmatpush.msra.mxu0 0.0
    %615 = vmatpush.msra.mxu0 %v600
    %616 = vmatpush.msra.mxu0 %v382
    %617 = vmatpush.msra.mxu0 %v381
    %618 = vmatmul.f32.gmra.mxu0 %v597
    %v619 = vpop.f32.mrf.mxu0
    %v620 = vadd.f32 0.0, %v619
    %621 = vdwg.mxu0
    %v623 = vsel %vm387, %v356, 0
    %v626 = vsel %vm193, %v386, 0
    %628 = vmatpush.msra.mxu0 0.0
    %629 = vmatpush.msra.mxu0 0.0
    %630 = vmatpush.msra.mxu0 0.0
    %631 = vmatpush.msra.mxu0 0.0
    %632 = vmatpush.msra.mxu0 0.0
    %633 = vmatpush.msra.mxu0 0.0
    %634 = vmatpush.msra.mxu0 0.0
    %635 = vmatpush.msra.mxu0 0.0
    %636 = vmatpush.msra.mxu0 0.0
    %637 = vmatpush.msra.mxu0 0.0
    %638 = vmatpush.msra.mxu0 0.0
    %639 = vmatpush.msra.mxu0 0.0
    %640 = vmatpush.msra.mxu0 0.0
    %641 = vmatpush.msra.mxu0 %v626
    %642 = vmatpush.msra.mxu0 %v385
    %643 = vmatpush.msra.mxu0 %v384
    %644 = vmatmul.f32.gmra.mxu0 %v623
    %v645 = vpop.f32.mrf.mxu0
    %v646 = vadd.f32 0.0, %v645
    %647 = vdwg.mxu0
    %v648 = vsel %vm162, %v412, 0.0
    %v649 = vsel %vm162, %v438, 0.0
    %v650 = vadd.f32 %v648, %v649
    %v651 = vsel %vm162, %v464, 0.0
    %v652 = vadd.f32 %v650, %v651
    %v653 = vsel %vm162, %v490, 0.0
    %v654 = vadd.f32 %v652, %v653
    %v655 = vsel %vm162, %v516, 0.0
    %v656 = vadd.f32 %v654, %v655
    %v657 = vsel %vm162, %v542, 0.0
    %v658 = vadd.f32 %v656, %v657
    %v659 = vsel %vm162, %v568, 0.0
    %v660 = vadd.f32 %v658, %v659
    %v661 = vsel %vm162, %v594, 0.0
    %v662 = vadd.f32 %v660, %v661
    %v663 = vsel %vm162, %v620, 0.0
    %v664 = vadd.f32 %v662, %v663
    %v665 = vsel %vm162, %v646, 0.0
    %v666 = vadd.f32 %v664, %v665
    %v667 = vld [vmem:[%s8] sm:$0x1]
    %v669 = vperm.slane %v667, 0
    %v671 = vadd.f32 %v666, %v669
    %v672 = vmax.f32 %v671, 0.0
    %v673 = vld [vmem:[%s9] sm:$0xff]
    %v674 = vld [vmem:[%s9 + $0x8] sm:$0xff]
    %v675 = vld [vmem:[%s9 + $0x10] sm:$0xff]
    %v676 = vld [vmem:[%s9 + $0x18] sm:$0xff]
    %v677 = vld [vmem:[%s9 + $0x20] sm:$0xff]
    %v678 = vld [vmem:[%s9 + $0x28] sm:$0xff]
    %v679 = vld [vmem:[%s9 + $0x30] sm:$0xff]
    %v680 = vld [vmem:[%s9 + $0x38] sm:$0xff]
    %v681 = vld [vmem:[%s9 + $0x40] sm:$0xff]
    %v682 = vld [vmem:[%s9 + $0x48] sm:$0xff]
    %v683 = vld [vmem:[%s9 + $0x50] sm:$0xff]
    %v684 = vld [vmem:[%s9 + $0x58] sm:$0xff]
    %v685 = vld [vmem:[%s9 + $0x60] sm:$0xf]
    %v686 = vld [vmem:[%s10] sm:$0x1]
    %v688 = vperm.slane %v686, 0
    %v691 = vsel %vm162, %v672, 0
    %v694 = vsel %vm193, %v685, 0
    %696 = vmatpush.msra.mxu0 0.0
    %697 = vmatpush.msra.mxu0 0.0
    %698 = vmatpush.msra.mxu0 0.0
    %699 = vmatpush.msra.mxu0 %v694
    %700 = vmatpush.msra.mxu0 %v684
    %701 = vmatpush.msra.mxu0 %v683
    %702 = vmatpush.msra.mxu0 %v682
    %703 = vmatpush.msra.mxu0 %v681
    %704 = vmatpush.msra.mxu0 %v680
    %705 = vmatpush.msra.mxu0 %v679
    %706 = vmatpush.msra.mxu0 %v678
    %707 = vmatpush.msra.mxu0 %v677
    %708 = vmatpush.msra.mxu0 %v676
    %709 = vmatpush.msra.mxu0 %v675
    %710 = vmatpush.msra.mxu0 %v674
    %711 = vmatpush.msra.mxu0 %v673
    %712 = vmatmul.f32.gmra.mxu0 %v691
    %v713 = vpop.f32.mrf.mxu0
    %v714 = vadd.f32 %v688, %v713
    %715 = vdwg.mxu0
    %vm716 = vcmask 64512
    %717 = vst.msk [vmem:[#allocation2] sm:$0xff] %vm716, %v714
    // Predicated region
    $region46: #{tpu_custom_call.1} parent=1 // pred_check
      _
    $region47: #{tpu_custom_call.1} parent=1 // pred_check_branch
      %719 = sbr.rel (0) target = $region49
    $region48: #{tpu_custom_call.1} parent=1 // pred_region
      %721 = vsyncadd [#allocation3], 0
      %s723 = sshll.u32 [#allocation2], 4
      %s724 = int_to_ptr.vmem [resolvable:$true] %s723
      %s725 = sshll.u32 %s11, 4
      %s726 = int_to_ptr.hbm [resolvable:$true] %s725
      %728 = dma.vmem_to_hbm [thread:$0]  %s724, 128, %s726, [#allocation3]
    $region49: #{tpu_custom_call.1} parent=1 // pred_fallthru
      _
    // Predicated region
    $region50: #{tpu_custom_call.1} parent=1 // pred_check
      _
    $region51: #{tpu_custom_call.1} parent=1 // pred_check_branch
      %730 = sbr.rel (0) target = $region53
    $region52: #{tpu_custom_call.1} parent=1 // pred_region
      %732 = dma.done [#allocation3], 128
    $region53: #{tpu_custom_call.1} parent=1 // pred_fallthru
      _
    %733 = vsyncpa [#allocation3], 1

</llo_original>
